<compile_context>
chip_gen: v7x
topology: tpu7x:2x2x1
jax: 0.10.0
libtpu: 0.0.40
codegen_flags: <defaults>
</compile_context>

<pallas_src>
import math

import jax
import jax.numpy as jnp
from jax.experimental import pallas as pl
from jax.experimental.pallas import tpu as pltpu

LANES = 128
_WIDTH_CANDIDATES = (1024, 512, 256, 128)


def _chip_budget():
    """(per-operand tile bytes, scoped-VMEM limit) tuned per TPU generation."""
    try:
        cap = pltpu.get_tpu_info().vmem_capacity_bytes
    except Exception:
        # Unknown chip / emulation: use the conservative (v7x) numbers.
        cap = 64 << 20
    if cap >= (100 << 20):         # v5e / v6e: 128 MiB VMEM per TensorCore.
        return 4 << 20, 64 << 20   # 4 MiB/operand tiles, 64 MiB scoped limit.
    return 2 << 20, 32 << 20       # v7x (64 MiB/TC): 2 MiB tiles, 32 MiB limit.


def _round_up(x, m):
    return -(-x // m) * m


def _wc_kernel_runtime(w_ref, inp_ref, edges_ref, attn_ref, out_ref):
    """Runtime-weight kernel: w_ref is a float32 (3,) vector in SMEM."""
    acc = (
        w_ref[0] * inp_ref[...].astype(jnp.float32)
        + w_ref[1] * edges_ref[...].astype(jnp.float32)
        + w_ref[2] * attn_ref[...].astype(jnp.float32)
    )
    out_ref[...] = acc.astype(out_ref.dtype)


def _make_static_kernel(weights):
    """Elementwise kernel with the (nonzero) weights baked in as f32 constants."""

    def kernel(*refs):
        out_ref = refs[-1]
        acc = None
        for w, ref in zip(weights, refs[:-1]):
            x = ref[...].astype(jnp.float32)
            term = x if w == 1.0 else x * jnp.float32(w)
            acc = term if acc is None else acc + term
        out_ref[...] = acc.astype(out_ref.dtype)

    return kernel


def _streaming_call(kernel, vmem_inputs, smem_inputs, rows, width, dtype):
    """Single-axis-grid streaming pallas_call over (rows, width) slabs."""
    itemsize = jnp.dtype(dtype).itemsize
    tile_bytes, vmem_limit = _chip_budget()
    row_tile = max(8, (tile_bytes // (width * itemsize)) // 8 * 8)
    row_tile = min(row_tile, rows)
    if rows >= 16:
        # Guarantee >= 2 grid steps so both v7x TensorCores get work; the extra
        # ~0.35 us step is negligible on single-TC chips.
        row_tile = min(row_tile, _round_up(pl.cdiv(rows, 2), 8))
    grid = (pl.cdiv(rows, row_tile),)
    tile_spec = pl.BlockSpec((row_tile, width), lambda i: (i, 0))
    in_specs = (
        [pl.BlockSpec(memory_space=pltpu.MemorySpace.SMEM)] * len(smem_inputs)
        + [tile_spec] * len(vmem_inputs)
    )
    k = len(vmem_inputs)
    n = rows * width
    cost = pl.CostEstimate(
        flops=max(2 * k - 1, 1) * n,
        transcendentals=0,
        bytes_accessed=(k + 1) * n * itemsize,
    )
    return pl.pallas_call(
        kernel,
        out_shape=jax.ShapeDtypeStruct((rows, width), dtype),
        grid=grid,
        in_specs=in_specs,
        out_specs=tile_spec,
        compiler_params=pltpu.CompilerParams(
            dimension_semantics=("parallel",),
            vmem_limit_bytes=vmem_limit,
        ),
        cost_estimate=cost,
    )(*smem_inputs, *vmem_inputs)


def _whole_array_call(kernel, vmem_inputs, smem_inputs, shape, dtype):
    """Single-block pallas_call (no grid): whole arrays resident in VMEM."""
    _, vmem_limit = _chip_budget()
    in_specs = (
        [pl.BlockSpec(memory_space=pltpu.MemorySpace.SMEM)] * len(smem_inputs)
        + [pl.BlockSpec(memory_space=pltpu.MemorySpace.VMEM)] * len(vmem_inputs)
    )
    return pl.pallas_call(
        kernel,
        out_shape=jax.ShapeDtypeStruct(shape, dtype),
        in_specs=in_specs,
        out_specs=pl.BlockSpec(memory_space=pltpu.MemorySpace.VMEM),
        compiler_params=pltpu.CompilerParams(vmem_limit_bytes=vmem_limit),
    )(*smem_inputs, *vmem_inputs)


def weighted_combination(inp, edges, attn_map, w1, w2, w3):
    """Pallas implementation of WeightedCombination.forward.

    inp, edges, attn_map: arrays of identical shape (e.g. NCHW float32).
    w1, w2, w3: scalar weights.  Python numbers -> specialized kernel that
    skips zero-weighted HBM streams (and an identity fast path for (1,0,0));
    JAX/numpy scalars -> general runtime-weight kernel with f32 SMEM weights.
    """
    assert inp.shape == edges.shape == attn_map.shape
    orig_shape = inp.shape
    dtype = inp.dtype
    itemsize = jnp.dtype(dtype).itemsize
    n = math.prod(orig_shape)
    if n == 0:
        return inp

    static = all(
        isinstance(w, (int, float)) and not isinstance(w, bool)
        for w in (w1, w2, w3)
    )

    if static:
        ws = (float(w1), float(w2), float(w3))
        pairs = [(w, x) for w, x in zip(ws, (inp, edges, attn_map)) if w != 0.0]
        if not pairs:
            # All weights statically zero.
            return jnp.zeros(orig_shape, dtype)
        if len(pairs) == 1 and pairs[0][0] == 1.0:
            # Module-init case (1,0,0): pure identity, zero HBM traffic.
            return pairs[0][1]
        kernel = _make_static_kernel([w for w, _ in pairs])
        vmem_operands = [x for _, x in pairs]
        smem_operands = []
    else:
        kernel = _wc_kernel_runtime
        vmem_operands = [inp, edges, attn_map]
        smem_operands = [
            jnp.stack([jnp.asarray(w, jnp.float32) for w in (w1, w2, w3)])
        ]

    if n % LANES == 0:
        # Main path: lane-dense 2-D slabs; the flat reshapes are free (contiguous).
        width = next(w for w in _WIDTH_CANDIDATES if n % w == 0)
        rows = n // width
        vmem_2d = [x.reshape(rows, width) for x in vmem_operands]
        out2d = _streaming_call(kernel, vmem_2d, smem_operands, rows, width, dtype)
        return out2d.reshape(orig_shape)

    # Ragged sizes (n % 128 != 0): no slicing / padding / concatenation copies.
    _, vmem_limit = _chip_budget()
    footprint = (len(vmem_operands) + 1) * n * itemsize
    if footprint <= vmem_limit // 2:
        return _whole_array_call(kernel, vmem_operands, smem_operands, orig_shape, dtype)

    # TODO(synk): tile the huge-ragged case with a masked flat 1-D BlockSpec;
    # the fused XLA elementwise below is already at the HBM roofline for this
    # memory-bound op, so nothing is lost performance-wise.
    wa = [jnp.asarray(w, jnp.float32) for w in (w1, w2, w3)]
    acc = (
        wa[0] * inp.astype(jnp.float32)
        + wa[1] * edges.astype(jnp.float32)
        + wa[2] * attn_map.astype(jnp.float32)
    )
    return acc.astype(dtype)


if __name__ == "__main__":
    key = jax.random.PRNGKey(0)
    k1, k2, k3 = jax.random.split(key, 3)
    shape = (2, 4, 16, 16)  # NCHW, as implied by the module's image inputs.
    inp = jax.random.normal(k1, shape, dtype=jnp.float32)
    edges = jax.random.normal(k2, shape, dtype=jnp.float32)
    attn_map = jax.random.normal(k3, shape, dtype=jnp.float32)

    # 1) Module-init weights (1,0,0) as static Python floats -> identity fast path.
    out = jax.block_until_ready(
        weighted_combination(inp, edges, attn_map, 1.0, 0.0, 0.0)
    )
    assert out.shape == shape and out.dtype == jnp.float32
    assert jnp.allclose(out, inp)

    # 2) Static non-trivial weights (zero-weighted stream dropped from HBM traffic).
    out = jax.block_until_ready(
        weighted_combination(inp, edges, attn_map, 0.5, 0.25, 0.0)
    )
    ref = 0.5 * inp + 0.25 * edges
    assert jnp.allclose(out, ref, atol=1e-6, rtol=1e-6)

    # 3) Runtime (learned) weights as JAX scalars -> SMEM-f32-weight streaming kernel.
    w1 = jnp.float32(0.7)
    w2 = jnp.float32(0.2)
    w3 = jnp.float32(0.1)
    out = jax.block_until_ready(weighted_combination(inp, edges, attn_map, w1, w2, w3))
    ref = w1 * inp + w2 * edges + w3 * attn_map
    assert jnp.allclose(out, ref, atol=1e-6, rtol=1e-6)

    # 4) Larger 128-divisible size -> multi-step grid (exercises the >=2-step split).
    shape2 = (2, 4, 32, 128)
    a = jax.random.normal(k1, shape2, dtype=jnp.float32)
    b = jax.random.normal(k2, shape2, dtype=jnp.float32)
    c = jax.random.normal(k3, shape2, dtype=jnp.float32)
    out = jax.block_until_ready(weighted_combination(a, b, c, w1, w2, w3))
    ref = w1 * a + w2 * b + w3 * c
    assert jnp.allclose(out, ref, atol=1e-6, rtol=1e-6)

    # 5) Ragged size (n % 128 != 0) -> single whole-array block, no slices/pads/concat.
    shape3 = (2, 3, 5, 7)
    a = jax.random.normal(k1, shape3, dtype=jnp.float32)
    b = jax.random.normal(k2, shape3, dtype=jnp.float32)
    c = jax.random.normal(k3, shape3, dtype=jnp.float32)
    out = jax.block_until_ready(weighted_combination(a, b, c, w1, w2, w3))
    ref = w1 * a + w2 * b + w3 * c
    assert jnp.allclose(out, ref, atol=1e-6, rtol=1e-6)

    print("KERNEL_OK")
</pallas_src>

<mosaic_0001>
module attributes {stable_mosaic.version = 11 : i64} {
  func.func @kernel(%arg0: i32, %arg1: memref<2x1024xf32, #tpu.memory_space<vmem>>, %arg2: memref<2x1024xf32, #tpu.memory_space<vmem>>, %arg3: memref<2x1024xf32, #tpu.memory_space<vmem>>) attributes {dimension_semantics = [#tpu.dimension_semantics<parallel>], iteration_bounds = array<i64: 1>, scalar_prefetch = 0 : i64, scratch_operands = 0 : i64, tpu.core_type = #tpu.core_type<tc>, window_params = [{transform_indices = @transform_0, window_bounds = array<i64: 2, 1024>}, {transform_indices = @transform_1, window_bounds = array<i64: 2, 1024>}, {transform_indices = @transform_2, window_bounds = array<i64: 2, 1024>}]} {
    %c0 = arith.constant 0 : index
    %c0_0 = arith.constant 0 : index
    %0 = vector.load %arg1[%c0, %c0_0] : memref<2x1024xf32, #tpu.memory_space<vmem>>, vector<2x1024xf32>
    %cst = arith.constant 5.000000e-01 : f32
    %1 = vector.broadcast %cst : f32 to vector<2x1024xf32>
    %2 = arith.mulf %0, %1 : vector<2x1024xf32>
    %c0_1 = arith.constant 0 : index
    %c0_2 = arith.constant 0 : index
    %3 = vector.load %arg2[%c0_1, %c0_2] : memref<2x1024xf32, #tpu.memory_space<vmem>>, vector<2x1024xf32>
    %cst_3 = arith.constant 2.500000e-01 : f32
    %4 = vector.broadcast %cst_3 : f32 to vector<2x1024xf32>
    %5 = arith.mulf %3, %4 : vector<2x1024xf32>
    %6 = arith.addf %2, %5 : vector<2x1024xf32>
    %c0_4 = arith.constant 0 : index
    %c0_5 = arith.constant 0 : index
    %7 = vector.load %arg3[%c0_4, %c0_5] : memref<2x1024xf32, #tpu.memory_space<vmem>>, vector<2x1024xf32>
    tpu.vector_store %arg3[%c0_4, %c0_5], %6 {strides = array<i32>} : memref<2x1024xf32, #tpu.memory_space<vmem>>, vector<2x1024xf32>,
    return
  }
  func.func @transform_0(%arg0: i32) -> (i32, i32) {
    %c0_i32 = arith.constant 0 : i32
    %c0_i32_0 = arith.constant 0 : i32
    return %arg0, %c0_i32 : i32, i32
  }
  func.func @transform_1(%arg0: i32) -> (i32, i32) {
    %c0_i32 = arith.constant 0 : i32
    %c0_i32_0 = arith.constant 0 : i32
    return %arg0, %c0_i32 : i32, i32
  }
  func.func @transform_2(%arg0: i32) -> (i32, i32) {
    %c0_i32 = arith.constant 0 : i32
    %c0_i32_0 = arith.constant 0 : i32
    return %arg0, %c0_i32 : i32, i32
  }
}

</mosaic_0001>

<llo_original>
// kernel: tpu_custom_call.1
$region0: #{tpu_custom_call.1}
  #allocation0 [shape = 'u32[]', space=smem, size = 0x4, offset = 0x4, fixed_abs, tag = 'smem constant byte address 0x4 - core index']
  #allocation1 [shape = 'u32[144,128]{1,0:T(1,128)}', space=vmem, size = 0x12000, scoped, tag = 'internal scratch']
  %s0 = inlined_call_operand.hbm [shape: f32[2,1024], index: 0, kind: input, shape index: {}]
  %s1 = inlined_call_operand.hbm [shape: f32[2,1024], index: 1, kind: input, shape index: {}]
  %s2 = inlined_call_operand.hbm [shape: f32[2,1024], index: 2, kind: output, shape index: {}]
  %s3 = sld [smem:[#allocation0]]
  $region26: #{tpu_custom_call.1} parent=0
    _
  %s5 = ssub.s32 1, %s3
  %s6 = scalar_select 0, %s5, %s3
  $region1: #{tpu_custom_call.1} parent=0
    #allocation2 [shape = 'u8[8192]{0}', space=vmem, size = 0x2000, scoped, tag = 'input window, operand 0, single buffered']
    #allocation3 [shape = 's32[1]{0}', space=sflag, size = 0x4, scoped, tag = 'scoped memory for tpu_custom_call.1']
    #allocation4 [shape = 's32[1]{0}', space=sflag, size = 0x4, scoped, tag = 'scoped memory for tpu_custom_call.1']
    #allocation5 [shape = 'u8[8192]{0}', space=vmem, size = 0x2000, scoped, tag = 'input window, operand 1, single buffered']
    #allocation6 [shape = 's32[1]{0}', space=sflag, size = 0x4, scoped, tag = 'scoped memory for tpu_custom_call.1']
    #allocation7 [shape = 'u8[8192]{0}', space=vmem, size = 0x2000, scoped, tag = 'output window, operand 0, single buffered']
    %7 = vsyncpa [#allocation3], 0
    %8 = vsyncpa [#allocation6], 0
    %9 = vsyncpa [#allocation4], 0
    // Predicated region
    $region2: #{tpu_custom_call.1} parent=1 // pred_check
      _
    $region3: #{tpu_custom_call.1} parent=1 // pred_check_branch
      %11 = sbr.rel (0) target = $region5
    $region4: #{tpu_custom_call.1} parent=1 // pred_region
      %s13 = ssub.s32 256, 256
      %14 = vsyncadd [#allocation3], %s13
      %s16 = sshll.u32 [#allocation2], 4
      %s17 = int_to_ptr.vmem [resolvable:$true] %s16
      %19 = dma.hbm_to_vmem [thread:$0]  %s0, 256, %s17, [#allocation3]
    $region5: #{tpu_custom_call.1} parent=1 // pred_fallthru
      _
    // Predicated region
    $region6: #{tpu_custom_call.1} parent=1 // pred_check
      _
    $region7: #{tpu_custom_call.1} parent=1 // pred_check_branch
      %21 = sbr.rel (0) target = $region9
    $region8: #{tpu_custom_call.1} parent=1 // pred_region
      %s23 = ssub.s32 256, 256
      %24 = vsyncadd [#allocation6], %s23
      %s26 = sshll.u32 [#allocation5], 4
      %s27 = int_to_ptr.vmem [resolvable:$true] %s26
      %29 = dma.hbm_to_vmem [thread:$0]  %s1, 256, %s27, [#allocation6]
    $region9: #{tpu_custom_call.1} parent=1 // pred_fallthru
      _
    // Predicated region
    $region10: #{tpu_custom_call.1} parent=1 // pred_check
      _
    $region11: #{tpu_custom_call.1} parent=1 // pred_check_branch
      %31 = sbr.rel (0) target = $region13
    $region12: #{tpu_custom_call.1} parent=1 // pred_region
      %32 = dma.done [#allocation3], 256
    $region13: #{tpu_custom_call.1} parent=1 // pred_fallthru
      _
    // Predicated region
    $region14: #{tpu_custom_call.1} parent=1 // pred_check
      _
    $region15: #{tpu_custom_call.1} parent=1 // pred_check_branch
      %34 = sbr.rel (0) target = $region17
    $region16: #{tpu_custom_call.1} parent=1 // pred_region
      %35 = dma.done [#allocation6], 256
    $region17: #{tpu_custom_call.1} parent=1 // pred_fallthru
      _
    %v36 = vld [vmem:[#allocation2] sm:$0xff]
    %v37 = vld [vmem:[#allocation2 + $0x8] sm:$0xff]
    %v38 = vmul.f32 %v36, 0.5
    %v39 = vmul.f32 %v37, 0.5
    %v40 = vld [vmem:[#allocation5] sm:$0xff]
    %v41 = vld [vmem:[#allocation5 + $0x8] sm:$0xff]
    %v42 = vmul.f32 %v40, 0.25
    %v43 = vmul.f32 %v41, 0.25
    %v44 = vadd.f32 %v38, %v42
    %v45 = vadd.f32 %v39, %v43
    %46 = vst [vmem:[#allocation7] sm:$0xff] %v44
    %47 = vst [vmem:[#allocation7 + $0x8] sm:$0xff] %v45
    // Predicated region
    $region18: #{tpu_custom_call.1} parent=1 // pred_check
      _
    $region19: #{tpu_custom_call.1} parent=1 // pred_check_branch
      %49 = sbr.rel (0) target = $region21
    $region20: #{tpu_custom_call.1} parent=1 // pred_region
      %s51 = ssub.s32 256, 256
      %52 = vsyncadd [#allocation4], %s51
      %s54 = sshll.u32 [#allocation7], 4
      %s55 = int_to_ptr.vmem [resolvable:$true] %s54
      %57 = dma.vmem_to_hbm [thread:$0]  %s55, 256, %s2, [#allocation4]
    $region21: #{tpu_custom_call.1} parent=1 // pred_fallthru
      _
    // Predicated region
    $region22: #{tpu_custom_call.1} parent=1 // pred_check
      _
    $region23: #{tpu_custom_call.1} parent=1 // pred_check_branch
      %59 = sbr.rel (0) target = $region25
    $region24: #{tpu_custom_call.1} parent=1 // pred_region
      %60 = dma.done [#allocation4], 256
    $region25: #{tpu_custom_call.1} parent=1 // pred_fallthru
      _
    %61 = vsyncpa [#allocation3], 1
    %62 = vsyncpa [#allocation6], 1
    %63 = vsyncpa [#allocation4], 1

</llo_original>
